<compile_context>
chip_gen: v7x
topology: tpu7x:2x2x1
jax: 0.10.0
libtpu: 0.0.40
codegen_flags: <defaults>
</compile_context>

<pallas_src>
import functools
import math

import jax
import jax.numpy as jnp
import numpy as np
from jax import lax
from jax.experimental import pallas as pl
from jax.experimental.pallas import tpu as pltpu

STATE_DIM = 80          # 2 parts * 5 features * 8 timesteps
ACTION_DIM = 4          # alpha (2) + beta (2)
ACTION_STD = 0.5
T = 8
N_OUT = 8               # packed output lanes: mean[0:4], log_prob[4], value[5]


def _actor_critic_kernel(state_ref, action_ref,
                         w1_ref, b1_ref, w2_ref, b2_ref, w3_ref, b3_ref,
                         out_ref, *, ad, inv_var, lp_const, dot_dtype):
    f32 = jnp.float32

    # Stage 1: actor layer-1 (block-diag) + critic layer-1 fused -> (TB, 160)
    st = state_ref[...].astype(dot_dtype)
    a1 = jnp.tanh(jnp.dot(st, w1_ref[...], preferred_element_type=f32)
                  + b1_ref[...])
    # Stage 2: actor layer-2 + critic layer-2 fused (block-diag) -> (TB, 128)
    a2 = jnp.tanh(jnp.dot(a1.astype(dot_dtype), w2_ref[...],
                          preferred_element_type=f32) + b2_ref[...])
    # Stage 3: alpha/beta head + critic value fused -> (TB, 8)
    #   lanes 0:ad = action_mean, lane ad+1 = state_value, lane ad free for lp.
    o3 = jnp.dot(a2.astype(dot_dtype), w3_ref[...],
                 preferred_element_type=f32) + b3_ref[...]

    # Diag-Gaussian log_prob (f32; entropy is a constant, hoisted to wrapper).
    mean = o3[:, 0:ad]
    diff = action_ref[...] - mean
    quad = jnp.sum(diff * diff, axis=1, keepdims=True) * inv_var
    lp = lp_const - 0.5 * quad                                   # (TB, 1)

    # Single packed store: splice log_prob into lane `ad`.
    lane = lax.broadcasted_iota(jnp.int32, o3.shape, 1)
    out_ref[...] = jnp.where(lane == ad, lp, o3)


def make_params(key, action_dim=ACTION_DIM, state_dim=STATE_DIM):
    ks = jax.random.split(key, 10)

    def lin(k, out_f, in_f):
        kw, kb = jax.random.split(k)
        bound = 1.0 / math.sqrt(in_f)
        W = jax.random.uniform(kw, (out_f, in_f), jnp.float32, -bound, bound)
        b = jax.random.uniform(kb, (out_f,), jnp.float32, -bound, bound)
        return W, b

    p = {}
    p["edge1"] = lin(ks[0], 2, 5)
    p["cloud1"] = lin(ks[1], 2, 5)    # present in module, unused in forward
    p["edge2"] = lin(ks[2], 32, 16)
    p["cloud2"] = lin(ks[3], 32, 16)  # present in module, unused in forward
    p["alpha"] = lin(ks[4], action_dim // 2, 64)
    p["beta"] = lin(ks[5], action_dim // 2, 64)
    p["c1"] = lin(ks[6], 128, state_dim)
    p["c2"] = lin(ks[7], 64, 128)
    p["c3"] = lin(ks[8], 1, 64)
    p["action_var"] = jnp.full((action_dim,), ACTION_STD * ACTION_STD, jnp.float32)
    return p


def _round_up(x, m):
    return ((x + m - 1) // m) * m


def pack_params(p):
    """One-time host-side packing into 3 fused block-diagonal matmuls."""
    W1, b1 = [np.asarray(a, np.float32) for a in p["edge1"]]
    W2, b2 = [np.asarray(a, np.float32) for a in p["edge2"]]
    Wa, ba = [np.asarray(a, np.float32) for a in p["alpha"]]
    Wb, bb = [np.asarray(a, np.float32) for a in p["beta"]]
    Wc1, bc1 = [np.asarray(a, np.float32) for a in p["c1"]]
    Wc2, bc2 = [np.asarray(a, np.float32) for a in p["c2"]]
    Wc3, bc3 = [np.asarray(a, np.float32) for a in p["c3"]]
    var = np.asarray(p["action_var"], np.float32)
    ad = var.shape[0]
    na = ad // 2

    # --- actor layer-1 block diagonal (80, 32) ---
    # state flat index = part*40 + feature*8 + t   (torch reshape(B,2,5,-1))
    # h1    flat index = part*16 + t*2 + j         (torch transpose + flatten)
    W1_bd = np.zeros((STATE_DIM, 2 * T * 2), np.float32)
    b1_bd = np.zeros((2 * T * 2,), np.float32)
    for part in range(2):
        for t in range(T):
            for j in range(2):
                col = part * 16 + t * 2 + j
                b1_bd[col] = b1[j]
                for f in range(5):
                    W1_bd[part * 40 + f * 8 + t, col] = W1[j, f]

    # --- stage 1: [actor L1 | critic L1]  (80, 160) ---
    W_s1 = np.zeros((STATE_DIM, 32 + 128), np.float32)
    W_s1[:, :32] = W1_bd
    W_s1[:, 32:] = Wc1.T
    b_s1 = np.concatenate([b1_bd, bc1])

    # --- stage 2: diag(actor L2 block-diag, critic L2)  (160, 128) ---
    # affine_edge2 on BOTH halves (torch forward never uses affine_cloud*).
    W_s2 = np.zeros((160, 128), np.float32)
    W_s2[0:16, 0:32] = W2.T
    W_s2[16:32, 32:64] = W2.T
    W_s2[32:160, 64:128] = Wc2.T
    b_s2 = np.concatenate([b2, b2, bc2])

    # --- stage 3: fused alpha/beta head + critic value  (128, 8) ---
    W_s3 = np.zeros((128, N_OUT), np.float32)
    W_s3[0:64, 0:na] = Wa.T
    W_s3[0:64, na:ad] = Wb.T
    W_s3[64:128, ad + 1] = Wc3[0]
    b_s3 = np.zeros((N_OUT,), np.float32)
    b_s3[0:na] = ba
    b_s3[na:ad] = bb
    b_s3[ad + 1] = bc3[0]

    if not np.allclose(var, var[0]):
        # TODO(synk): non-uniform action_var would need a per-dim inv_var input.
        raise NotImplementedError("pack_params assumes uniform action_var")

    logdet = float(np.sum(np.log(var)))
    log2pi = math.log(2.0 * math.pi)
    lp_const = -0.5 * (ad * log2pi + logdet)
    entropy = 0.5 * ad * (1.0 + log2pi) + 0.5 * logdet

    return dict(
        W_s1=jnp.asarray(W_s1), b_s1=jnp.asarray(b_s1.reshape(1, -1)),
        W_s2=jnp.asarray(W_s2), b_s2=jnp.asarray(b_s2.reshape(1, -1)),
        W_s3=jnp.asarray(W_s3), b_s3=jnp.asarray(b_s3.reshape(1, -1)),
        inv_var=float(1.0 / var[0]), lp_const=float(lp_const),
        entropy=float(entropy), ad=int(ad),
    )


def build_evaluate(packed, *, tile_b=1024, dot_dtype=jnp.float32):
    """Pack/cast once, return a jitted ActorCritic.evaluate (+ action_mean).

    dot_dtype=jnp.bfloat16 is the recommended MXU path on v6e/v7x; tanh/bias
    and the log_prob math stay f32 in either mode (also right for v5e).
    """
    ad = packed["ad"]
    entropy = packed["entropy"]
    w1 = packed["W_s1"].astype(dot_dtype)
    w2 = packed["W_s2"].astype(dot_dtype)
    w3 = packed["W_s3"].astype(dot_dtype)
    weights = (w1, packed["b_s1"], w2, packed["b_s2"], w3, packed["b_s3"])
    tile = max(8, _round_up(int(tile_b), 8))

    kernel = functools.partial(
        _actor_critic_kernel, ad=ad, inv_var=packed["inv_var"],
        lp_const=packed["lp_const"], dot_dtype=dot_dtype)

    @jax.jit
    def evaluate(state, action):
        B = state.shape[0]
        n_tiles = max(1, -(-B // tile))
        if n_tiles == 1 and B >= 256:
            n_tiles = 2            # v7x megacore: keep both TensorCores busy
        TB = _round_up(-(-B // n_tiles), 8)
        Bp = TB * n_tiles
        pad = Bp - B

        state_p = state.astype(jnp.float32)
        action_p = action.astype(jnp.float32)
        if pad:
            state_p = jnp.pad(state_p, ((0, pad), (0, 0)))
            action_p = jnp.pad(action_p, ((0, pad), (0, 0)))

        def batch_spec(last):
            return pl.BlockSpec((TB, last), lambda i: (i, 0))

        def const_spec(w):
            # Same block every grid step -> weights stay VMEM-resident.
            return pl.BlockSpec(w.shape, lambda i: (0, 0))

        out = pl.pallas_call(
            kernel,
            out_shape=jax.ShapeDtypeStruct((Bp, N_OUT), jnp.float32),
            grid=(n_tiles,),
            in_specs=([batch_spec(STATE_DIM), batch_spec(ad)]
                      + [const_spec(w) for w in weights]),
            out_specs=batch_spec(N_OUT),
            compiler_params=pltpu.CompilerParams(
                dimension_semantics=("parallel",)),
        )(state_p, action_p, *weights)

        mean = out[:B, 0:ad]
        lp = out[:B, ad]
        val = jnp.squeeze(out[:B, ad + 1:ad + 2])
        # Entropy of a fixed-covariance diag Gaussian is data-independent.
        ent = jnp.full((B,), entropy, jnp.float32)
        # torch order: (action_logprobs, squeeze(state_value), dist_entropy)
        return mean, lp, val, ent

    return evaluate


def ref_evaluate(state, action, p):
    """Pure-JAX reference mirroring the torch code exactly."""
    B = state.shape[0]
    s4 = state.reshape(B, 2, 5, T).transpose(0, 1, 3, 2)
    W1, b1 = p["edge1"]
    W2, b2 = p["edge2"]
    edge = jnp.tanh(s4[:, 0] @ W1.T + b1)
    cloud = jnp.tanh(s4[:, 1] @ W1.T + b1)
    edge = jnp.tanh(edge.reshape(B, 16) @ W2.T + b2)
    cloud = jnp.tanh(cloud.reshape(B, 16) @ W2.T + b2)
    aggr = jnp.concatenate([edge, cloud], axis=1)
    Wa, ba = p["alpha"]
    Wb, bb = p["beta"]
    mean = jnp.concatenate([aggr @ Wa.T + ba, aggr @ Wb.T + bb], axis=1)
    var = p["action_var"]
    ad = var.shape[0]
    diff = action - mean
    quad = jnp.sum(diff * diff / var, axis=1)
    logdet = jnp.sum(jnp.log(var))
    lp = -0.5 * quad - 0.5 * (ad * math.log(2 * math.pi) + logdet)
    ent = jnp.full((B,), 0.5 * ad * (1.0 + math.log(2 * math.pi)) + 0.5 * logdet)
    Wc1, bc1 = p["c1"]
    Wc2, bc2 = p["c2"]
    Wc3, bc3 = p["c3"]
    c = jnp.tanh(state @ Wc1.T + bc1)
    c = jnp.tanh(c @ Wc2.T + bc2)
    val = jnp.squeeze(c @ Wc3.T + bc3)
    return mean, lp, val, ent


if __name__ == "__main__":
    key = jax.random.PRNGKey(0)
    kp, ks, ka = jax.random.split(key, 3)
    params = make_params(kp)
    packed = pack_params(params)           # packed once, outside the call path

    B = 2
    state = jax.random.normal(ks, (B, STATE_DIM), jnp.float32)
    action = jax.random.normal(ka, (B, ACTION_DIM), jnp.float32)

    r_am, r_lp, r_val, r_ent = ref_evaluate(state, action, params)

    # Exact (f32) path — tight correctness check vs. the torch-equivalent ref.
    eval_f32 = build_evaluate(packed, dot_dtype=jnp.float32)
    am, lp, val, ent = eval_f32(state, action)
    jax.block_until_ready((am, lp, val, ent))
    ok = (np.allclose(np.asarray(am), np.asarray(r_am), atol=1e-4)
          and np.allclose(np.asarray(lp), np.asarray(r_lp), atol=1e-4)
          and np.allclose(np.asarray(val), np.asarray(r_val), atol=1e-4)
          and np.allclose(np.asarray(ent), np.asarray(r_ent), atol=1e-4))

    # bf16 MXU path (v6e/v7x perf option) — loose smoke check.
    eval_bf16 = build_evaluate(packed, dot_dtype=jnp.bfloat16)
    am2, lp2, val2, ent2 = eval_bf16(state, action)
    jax.block_until_ready((am2, lp2, val2, ent2))
    ok = ok and all(np.all(np.isfinite(np.asarray(a))) for a in (am2, lp2, val2))
    ok = (ok
          and np.allclose(np.asarray(am2), np.asarray(r_am), atol=0.1)
          and np.allclose(np.asarray(lp2), np.asarray(r_lp), atol=0.5)
          and np.allclose(np.asarray(val2), np.asarray(r_val), atol=0.1)
          and np.allclose(np.asarray(ent2), np.asarray(r_ent), atol=1e-4))

    if ok:
        print("KERNEL_OK")
    else:
        print("MISMATCH",
              np.asarray(am), np.asarray(r_am),
              np.asarray(lp), np.asarray(r_lp),
              np.asarray(val), np.asarray(r_val))
</pallas_src>

<mosaic_0001>
module attributes {stable_mosaic.version = 11 : i64} {
  func.func @_actor_critic_kernel(%arg0: i32, %arg1: memref<8x80xf32, #tpu.memory_space<vmem>>, %arg2: memref<8x4xf32, #tpu.memory_space<vmem>>, %arg3: memref<80x160xf32, #tpu.memory_space<vmem>>, %arg4: memref<1x160xf32, #tpu.memory_space<vmem>>, %arg5: memref<160x128xf32, #tpu.memory_space<vmem>>, %arg6: memref<1x128xf32, #tpu.memory_space<vmem>>, %arg7: memref<128x8xf32, #tpu.memory_space<vmem>>, %arg8: memref<1x8xf32, #tpu.memory_space<vmem>>, %arg9: memref<8x8xf32, #tpu.memory_space<vmem>>) attributes {dimension_semantics = [#tpu.dimension_semantics<parallel>], iteration_bounds = array<i64: 1>, scalar_prefetch = 0 : i64, scratch_operands = 0 : i64, tpu.core_type = #tpu.core_type<tc>, window_params = [{transform_indices = @transform_0, window_bounds = array<i64: 8, 80>}, {transform_indices = @transform_1, window_bounds = array<i64: 8, 4>}, {pipeline_mode = #tpu.pipeline_mode<synchronous>, transform_indices = @transform_2, window_bounds = array<i64: 80, 160>}, {pipeline_mode = #tpu.pipeline_mode<synchronous>, transform_indices = @transform_3, window_bounds = array<i64: 1, 160>}, {pipeline_mode = #tpu.pipeline_mode<synchronous>, transform_indices = @transform_4, window_bounds = array<i64: 160, 128>}, {pipeline_mode = #tpu.pipeline_mode<synchronous>, transform_indices = @transform_5, window_bounds = array<i64: 1, 128>}, {pipeline_mode = #tpu.pipeline_mode<synchronous>, transform_indices = @transform_6, window_bounds = array<i64: 128, 8>}, {pipeline_mode = #tpu.pipeline_mode<synchronous>, transform_indices = @transform_7, window_bounds = array<i64: 1, 8>}, {transform_indices = @transform_8, window_bounds = array<i64: 8, 8>}]} {
    %c0 = arith.constant 0 : index
    %c0_0 = arith.constant 0 : index
    %0 = vector.load %arg1[%c0, %c0_0] : memref<8x80xf32, #tpu.memory_space<vmem>>, vector<8x80xf32>
    %c0_1 = arith.constant 0 : index
    %c0_2 = arith.constant 0 : index
    %1 = vector.load %arg3[%c0_1, %c0_2] : memref<80x160xf32, #tpu.memory_space<vmem>>, vector<80x160xf32>
    %cst = arith.constant dense<0.000000e+00> : vector<8x160xf32>
    %2 = tpu.matmul %0, %1, %cst {dimension_numbers = #tpu.dot_dimension_numbers<[1], [0], [0], [1], [0, 0, 1, 1], [], []>} : vector<8x80xf32>, vector<80x160xf32>, vector<8x160xf32> -> vector<8x160xf32>
    %c0_3 = arith.constant 0 : index
    %c0_4 = arith.constant 0 : index
    %3 = vector.load %arg4[%c0_3, %c0_4] : memref<1x160xf32, #tpu.memory_space<vmem>>, vector<1x160xf32>
    %4 = vector.broadcast %3 : vector<1x160xf32> to vector<8x160xf32>
    %5 = arith.addf %2, %4 : vector<8x160xf32>
    %6 = math.tanh %5 : vector<8x160xf32>
    %c0_5 = arith.constant 0 : index
    %c0_6 = arith.constant 0 : index
    %7 = vector.load %arg5[%c0_5, %c0_6] : memref<160x128xf32, #tpu.memory_space<vmem>>, vector<160x128xf32>
    %cst_7 = arith.constant dense<0.000000e+00> : vector<8x128xf32>
    %8 = tpu.matmul %6, %7, %cst_7 {dimension_numbers = #tpu.dot_dimension_numbers<[1], [0], [0], [1], [0, 0, 1, 1], [], []>} : vector<8x160xf32>, vector<160x128xf32>, vector<8x128xf32> -> vector<8x128xf32>
    %c0_8 = arith.constant 0 : index
    %c0_9 = arith.constant 0 : index
    %9 = vector.load %arg6[%c0_8, %c0_9] : memref<1x128xf32, #tpu.memory_space<vmem>>, vector<1x128xf32>
    %10 = vector.broadcast %9 : vector<1x128xf32> to vector<8x128xf32>
    %11 = arith.addf %8, %10 : vector<8x128xf32>
    %12 = math.tanh %11 : vector<8x128xf32>
    %c0_10 = arith.constant 0 : index
    %c0_11 = arith.constant 0 : index
    %13 = vector.load %arg7[%c0_10, %c0_11] : memref<128x8xf32, #tpu.memory_space<vmem>>, vector<128x8xf32>
    %cst_12 = arith.constant dense<0.000000e+00> : vector<8x8xf32>
    %14 = tpu.matmul %12, %13, %cst_12 {dimension_numbers = #tpu.dot_dimension_numbers<[1], [0], [0], [1], [0, 0, 1, 1], [], []>} : vector<8x128xf32>, vector<128x8xf32>, vector<8x8xf32> -> vector<8x8xf32>
    %c0_13 = arith.constant 0 : index
    %c0_14 = arith.constant 0 : index
    %15 = vector.load %arg8[%c0_13, %c0_14] : memref<1x8xf32, #tpu.memory_space<vmem>>, vector<1x8xf32>
    %16 = vector.broadcast %15 : vector<1x8xf32> to vector<8x8xf32>
    %17 = arith.addf %14, %16 : vector<8x8xf32>
    %18 = vector.extract_strided_slice %17 {offsets = [0, 0], sizes = [8, 4], strides = [1, 1]} : vector<8x8xf32> to vector<8x4xf32>
    %c0_15 = arith.constant 0 : index
    %c0_16 = arith.constant 0 : index
    %19 = vector.load %arg2[%c0_15, %c0_16] : memref<8x4xf32, #tpu.memory_space<vmem>>, vector<8x4xf32>
    %20 = arith.subf %19, %18 : vector<8x4xf32>
    %21 = arith.mulf %20, %20 : vector<8x4xf32>
    %cst_17 = arith.constant dense<0.000000e+00> : vector<8xf32>
    %22 = vector.multi_reduction <add>, %21, %cst_17 [1] : vector<8x4xf32> to vector<8xf32>
    %23 = vector.shape_cast %22 : vector<8xf32> to vector<8x1xf32>
    %cst_18 = arith.constant 4.000000e+00 : f32
    %24 = vector.broadcast %cst_18 : f32 to vector<8x1xf32>
    %25 = arith.mulf %23, %24 : vector<8x1xf32>
    %cst_19 = arith.constant 5.000000e-01 : f32
    %26 = vector.broadcast %cst_19 : f32 to vector<8x1xf32>
    %27 = arith.mulf %26, %25 : vector<8x1xf32>
    %cst_20 = arith.constant -0.9031654 : f32
    %28 = vector.broadcast %cst_20 : f32 to vector<8x1xf32>
    %29 = arith.subf %28, %27 : vector<8x1xf32>
    %30 = tpu.iota {dimensions = array<i32: 1>} : vector<8x8xi32>
    %c4_i32 = arith.constant 4 : i32
    %31 = vector.broadcast %c4_i32 : i32 to vector<8x8xi32>
    %32 = arith.cmpi eq, %30, %31 : vector<8x8xi32>
    %33 = vector.shape_cast %29 : vector<8x1xf32> to vector<8x1xf32>
    %34 = vector.broadcast %33 : vector<8x1xf32> to vector<8x8xf32>
    %35 = arith.select %32, %34, %17 : vector<8x8xi1>, vector<8x8xf32>
    %c0_21 = arith.constant 0 : index
    %c0_22 = arith.constant 0 : index
    %36 = vector.load %arg9[%c0_21, %c0_22] : memref<8x8xf32, #tpu.memory_space<vmem>>, vector<8x8xf32>
    tpu.vector_store %arg9[%c0_21, %c0_22], %35 {strides = array<i32>} : memref<8x8xf32, #tpu.memory_space<vmem>>, vector<8x8xf32>,
    return
  }
  func.func @transform_0(%arg0: i32) -> (i32, i32) {
    %c0_i32 = arith.constant 0 : i32
    %c0_i32_0 = arith.constant 0 : i32
    return %arg0, %c0_i32 : i32, i32
  }
  func.func @transform_1(%arg0: i32) -> (i32, i32) {
    %c0_i32 = arith.constant 0 : i32
    %c0_i32_0 = arith.constant 0 : i32
    return %arg0, %c0_i32 : i32, i32
  }
  func.func @transform_2(%arg0: i32) -> (i32, i32) {
    %c0_i32 = arith.constant 0 : i32
    %c0_i32_0 = arith.constant 0 : i32
    %c0_i32_1 = arith.constant 0 : i32
    return %c0_i32, %c0_i32_0 : i32, i32
  }
  func.func @transform_3(%arg0: i32) -> (i32, i32) {
    %c0_i32 = arith.constant 0 : i32
    %c0_i32_0 = arith.constant 0 : i32
    %c0_i32_1 = arith.constant 0 : i32
    return %c0_i32, %c0_i32_0 : i32, i32
  }
  func.func @transform_4(%arg0: i32) -> (i32, i32) {
    %c0_i32 = arith.constant 0 : i32
    %c0_i32_0 = arith.constant 0 : i32
    %c0_i32_1 = arith.constant 0 : i32
    return %c0_i32, %c0_i32_0 : i32, i32
  }
  func.func @transform_5(%arg0: i32) -> (i32, i32) {
    %c0_i32 = arith.constant 0 : i32
    %c0_i32_0 = arith.constant 0 : i32
    %c0_i32_1 = arith.constant 0 : i32
    return %c0_i32, %c0_i32_0 : i32, i32
  }
  func.func @transform_6(%arg0: i32) -> (i32, i32) {
    %c0_i32 = arith.constant 0 : i32
    %c0_i32_0 = arith.constant 0 : i32
    %c0_i32_1 = arith.constant 0 : i32
    return %c0_i32, %c0_i32_0 : i32, i32
  }
  func.func @transform_7(%arg0: i32) -> (i32, i32) {
    %c0_i32 = arith.constant 0 : i32
    %c0_i32_0 = arith.constant 0 : i32
    %c0_i32_1 = arith.constant 0 : i32
    return %c0_i32, %c0_i32_0 : i32, i32
  }
  func.func @transform_8(%arg0: i32) -> (i32, i32) {
    %c0_i32 = arith.constant 0 : i32
    %c0_i32_0 = arith.constant 0 : i32
    return %arg0, %c0_i32 : i32, i32
  }
}

</mosaic_0001>

<llo_original>
// kernel: evaluate.1
$region0: #{evaluate.1}
  #allocation0 [shape = 'u32[]', space=smem, size = 0x4, offset = 0x4, fixed_abs, tag = 'smem constant byte address 0x4 - core index']
  #allocation1 [shape = 'u32[144,128]{1,0:T(1,128)}', space=vmem, size = 0x12000, scoped, tag = 'internal scratch']
  %s0 = inlined_call_operand.vmem [shape: f32[8,80], index: 0, kind: input, shape index: {}]
  %s1 = inlined_call_operand.vmem [shape: f32[8,4], index: 1, kind: input, shape index: {}]
  %s2 = inlined_call_operand.hbm [shape: f32[80,160], index: 2, kind: input, shape index: {}]
  %s3 = inlined_call_operand.vmem [shape: f32[1,160], index: 3, kind: input, shape index: {}]
  %s4 = inlined_call_operand.hbm [shape: f32[160,128], index: 4, kind: input, shape index: {}]
  %s5 = inlined_call_operand.vmem [shape: f32[1,128], index: 5, kind: input, shape index: {}]
  %s6 = inlined_call_operand.hbm [shape: f32[128,8], index: 6, kind: input, shape index: {}]
  %s7 = inlined_call_operand.vmem [shape: f32[1,8], index: 7, kind: input, shape index: {}]
  %s8 = inlined_call_operand.vmem [shape: f32[8,8], index: 8, kind: output, shape index: {}]
  %s9 = sld [smem:[#allocation0]]
  $region54: #{evaluate.1} parent=0
    _
  %s11 = ssub.s32 1, %s9
  %s12 = scalar_select 0, %s11, %s9
  $region1: #{evaluate.1} parent=0
    #allocation2 [shape = 'u8[81920]{0}', space=vmem, size = 0x14000, scoped, tag = 'input window, operand 2, single buffered']
    #allocation3 [shape = 's32[1]{0}', space=sflag, size = 0x4, scoped, tag = 'scoped memory for evaluate.1']
    #allocation4 [shape = 'u8[81920]{0}', space=vmem, size = 0x14000, scoped, tag = 'input window, operand 4, single buffered']
    #allocation5 [shape = 's32[1]{0}', space=sflag, size = 0x4, scoped, tag = 'scoped memory for evaluate.1']
    #allocation6 [shape = 'u8[65536]{0}', space=vmem, size = 0x10000, scoped, tag = 'input window, operand 6, single buffered']
    %13 = vsyncpa [#allocation3], 0
    %14 = vsyncpa [#allocation5], 0
    // Predicated region
    $region2: #{evaluate.1} parent=1 // pred_check
      _
    $region3: #{evaluate.1} parent=1 // pred_check_branch
      %16 = sbr.rel (0) target = $region5
    $region4: #{evaluate.1} parent=1 // pred_region
      _
    $region5: #{evaluate.1} parent=1 // pred_fallthru
      _
    // Predicated region
    $region6: #{evaluate.1} parent=1 // pred_check
      _
    $region7: #{evaluate.1} parent=1 // pred_check_branch
      %18 = sbr.rel (0) target = $region9
    $region8: #{evaluate.1} parent=1 // pred_region
      _
    $region9: #{evaluate.1} parent=1 // pred_fallthru
      _
    // Predicated region
    $region10: #{evaluate.1} parent=1 // pred_check
      _
    $region11: #{evaluate.1} parent=1 // pred_check_branch
      %20 = sbr.rel (0) target = $region13
    $region12: #{evaluate.1} parent=1 // pred_region
      %s22 = ssub.s32 2560, 2560
      %23 = vsyncadd [#allocation3], %s22
      %s24 = sshll.u32 [#allocation2], 4
      %s25 = int_to_ptr.vmem [resolvable:$true] %s24
      %30 = dma.hbm_to_vmem [thread:$0]  %s2, 2560, %s25, [#allocation3], 256, 256, 16
    $region13: #{evaluate.1} parent=1 // pred_fallthru
      _
    // Predicated region
    $region14: #{evaluate.1} parent=1 // pred_check
      _
    $region15: #{evaluate.1} parent=1 // pred_check_branch
      %32 = sbr.rel (0) target = $region17
    $region16: #{evaluate.1} parent=1 // pred_region
      _
    $region17: #{evaluate.1} parent=1 // pred_fallthru
      _
    // Predicated region
    $region18: #{evaluate.1} parent=1 // pred_check
      _
    $region19: #{evaluate.1} parent=1 // pred_check_branch
      %34 = sbr.rel (0) target = $region21
    $region20: #{evaluate.1} parent=1 // pred_region
      %s36 = ssub.s32 2560, 2560
      %37 = vsyncadd [#allocation5], %s36
      %s38 = sshll.u32 [#allocation4], 4
      %s39 = int_to_ptr.vmem [resolvable:$true] %s38
      %44 = dma.hbm_to_vmem [thread:$0]  %s4, 2560, %s39, [#allocation5], 128, 128, 8
    $region21: #{evaluate.1} parent=1 // pred_fallthru
      _
    // Predicated region
    $region22: #{evaluate.1} parent=1 // pred_check
      _
    $region23: #{evaluate.1} parent=1 // pred_check_branch
      %46 = sbr.rel (0) target = $region25
    $region24: #{evaluate.1} parent=1 // pred_region
      _
    $region25: #{evaluate.1} parent=1 // pred_fallthru
      _
    // Predicated region
    $region26: #{evaluate.1} parent=1 // pred_check
      _
    $region27: #{evaluate.1} parent=1 // pred_check_branch
      %48 = sbr.rel (0) target = $region29
    $region28: #{evaluate.1} parent=1 // pred_region
      %s50 = ssub.s32 2048, 2048
      %51 = vsyncadd [#allocation5], %s50
      %s52 = sshll.u32 [#allocation6], 4
      %s53 = int_to_ptr.vmem [resolvable:$true] %s52
      %58 = dma.hbm_to_vmem [thread:$0]  %s6, 2048, %s53, [#allocation5], 128, 128, 8
    $region29: #{evaluate.1} parent=1 // pred_fallthru
      _
    // Predicated region
    $region30: #{evaluate.1} parent=1 // pred_check
      _
    $region31: #{evaluate.1} parent=1 // pred_check_branch
      %60 = sbr.rel (0) target = $region33
    $region32: #{evaluate.1} parent=1 // pred_region
      _
    $region33: #{evaluate.1} parent=1 // pred_fallthru
      _
    // Predicated region
    $region34: #{evaluate.1} parent=1 // pred_check
      _
    $region35: #{evaluate.1} parent=1 // pred_check_branch
      %62 = sbr.rel (0) target = $region37
    $region36: #{evaluate.1} parent=1 // pred_region
      %63 = dma.done [#allocation3], 2560
    $region37: #{evaluate.1} parent=1 // pred_fallthru
      _
    // Predicated region
    $region38: #{evaluate.1} parent=1 // pred_check
      _
    $region39: #{evaluate.1} parent=1 // pred_check_branch
      %65 = sbr.rel (0) target = $region41
    $region40: #{evaluate.1} parent=1 // pred_region
      %66 = dma.done [#allocation5], 2560
    $region41: #{evaluate.1} parent=1 // pred_fallthru
      _
    // Predicated region
    $region42: #{evaluate.1} parent=1 // pred_check
      _
    $region43: #{evaluate.1} parent=1 // pred_check_branch
      %68 = sbr.rel (0) target = $region45
    $region44: #{evaluate.1} parent=1 // pred_region
      %69 = dma.done [#allocation5], 2048
    $region45: #{evaluate.1} parent=1 // pred_fallthru
      _
    %v70 = vld [vmem:[%s0] sm:$0xff]
    %v71 = vld [vmem:[#allocation2] sm:$0xff]
    %v72 = vld [vmem:[#allocation2 + $0x8] sm:$0xff]
    %v73 = vld [vmem:[#allocation2 + $0x10] sm:$0xff]
    %v74 = vld [vmem:[#allocation2 + $0x18] sm:$0xff]
    %v75 = vld [vmem:[#allocation2 + $0x20] sm:$0xff]
    %v76 = vld [vmem:[#allocation2 + $0x28] sm:$0xff]
    %v77 = vld [vmem:[#allocation2 + $0x30] sm:$0xff]
    %v78 = vld [vmem:[#allocation2 + $0x38] sm:$0xff]
    %v79 = vld [vmem:[#allocation2 + $0x40] sm:$0xff]
    %v80 = vld [vmem:[#allocation2 + $0x48] sm:$0xff]
    %v81 = vld [vmem:[#allocation2 + $0x50] sm:$0xff]
    %v82 = vld [vmem:[#allocation2 + $0x58] sm:$0xff]
    %v83 = vld [vmem:[#allocation2 + $0x60] sm:$0xff]
    %v84 = vld [vmem:[#allocation2 + $0x68] sm:$0xff]
    %v85 = vld [vmem:[#allocation2 + $0x70] sm:$0xff]
    %v86 = vld [vmem:[#allocation2 + $0x78] sm:$0xff]
    %v87 = vld [vmem:[#allocation2 + $0x80] sm:$0xff]
    %v88 = vld [vmem:[#allocation2 + $0x88] sm:$0xff]
    %v89 = vld [vmem:[#allocation2 + $0x90] sm:$0xff]
    %v90 = vld [vmem:[#allocation2 + $0x98] sm:$0xff]
    %v91 = vld [vmem:[%s3] sm:$0x3]
    %v93 = vlaneseq
    %v94 = vshrl.u32 %v93, 7
    %v95 = vsub.s32 0, %v94
    %v96 = vrot.slane %v91, %v95
    %v97 = vlaneseq
    %v98 = vshrl.u32 %v97, 7
    %v99 = vsub.s32 1, %v98
    %v100 = vrot.slane %v91, %v99
    %vm103 = vcmask 654336
    %v105 = vsel %vm103, %v70, 0
    %107 = vmatprep.subr.mxu0 %v72
    %108 = vmatpush1.msra.mxu0 %v71
    %109 = vmatprep.subr.mxu0 %v74
    %110 = vmatpush1.msra.mxu0 %v73
    %111 = vmatprep.subr.mxu0 %v76
    %112 = vmatpush1.msra.mxu0 %v75
    %113 = vmatprep.subr.mxu0 %v78
    %114 = vmatpush1.msra.mxu0 %v77
    %115 = vmatprep.subr.mxu0 %v80
    %116 = vmatpush1.msra.mxu0 %v79
    %117 = vmatprep.subr.mxu0 %v82
    %118 = vmatpush1.msra.mxu0 %v81
    %119 = vmatprep.subr.mxu0 %v84
    %120 = vmatpush1.msra.mxu0 %v83
    %121 = vmatprep.subr.mxu0 %v86
    %122 = vmatpush1.msra.mxu0 %v85
    %123 = vmatprep.subr.mxu0 %v88
    %124 = vmatpush1.msra.mxu0 %v87
    %125 = vmatprep.subr.mxu0 %v90
    %126 = vmatpush1.msra.mxu0 %v89
    %127 = vmatprep.subr.mxu0 0.0
    %128 = vmatpush1.msra.mxu0 0.0
    %129 = vmatprep.subr.mxu0 0.0
    %130 = vmatpush1.msra.mxu0 0.0
    %131 = vmatprep.subr.mxu0 0.0
    %132 = vmatpush1.msra.mxu0 0.0
    %133 = vmatprep.subr.mxu0 0.0
    %134 = vmatpush1.msra.mxu0 0.0
    %135 = vmatprep.subr.mxu0 0.0
    %136 = vmatpush1.msra.mxu0 0.0
    %137 = vmatprep.subr.mxu0 0.0
    %138 = vmatpush1.msra.mxu0 0.0
    %139 = vmatprep.subr.mxu0 0.0
    %140 = vmatpush1.msra.mxu0 0.0
    %141 = vmatprep.subr.mxu0 0.0
    %142 = vmatpush1.msra.mxu0 0.0
    %143 = vmatprep.subr.mxu0 0.0
    %144 = vmatpush1.msra.mxu0 0.0
    %145 = vmatprep.subr.mxu0 0.0
    %146 = vmatpush1.msra.mxu0 0.0
    %147 = vmatprep.subr.mxu0 0.0
    %148 = vmatpush1.msra.mxu0 0.0
    %149 = vmatprep.subr.mxu0 0.0
    %150 = vmatpush1.msra.mxu0 0.0
    %151 = vmatprep.subr.mxu0 0.0
    %152 = vmatpush1.msra.mxu0 0.0
    %153 = vmatprep.subr.mxu0 0.0
    %154 = vmatpush1.msra.mxu0 0.0
    %155 = vmatprep.subr.mxu0 0.0
    %156 = vmatpush1.msra.mxu0 0.0
    %157 = vmatprep.subr.mxu0 0.0
    %158 = vmatpush1.msra.mxu0 0.0
    %159 = vmatprep.subr.mxu0 0.0
    %160 = vmatpush1.msra.mxu0 0.0
    %161 = vmatprep.subr.mxu0 0.0
    %162 = vmatpush1.msra.mxu0 0.0
    %163 = vmatprep.subr.mxu0 0.0
    %164 = vmatpush1.msra.mxu0 0.0
    %165 = vmatprep.subr.mxu0 0.0
    %166 = vmatpush1.msra.mxu0 0.0
    %167 = vmatprep.subr.mxu0 0.0
    %168 = vmatpush1.msra.mxu0 0.0
    %169 = vmatprep.subr.mxu0 0.0
    %170 = vmatpush1.msra.mxu0 0.0
    %171 = vmatprep.mubr.f32.mxu0 0.0
    %172 = vmatmul.mubr.f32.gmra.mrb[0].mxu0 %v105
    %v173 = vpop.f32.mrb[0].mxu0
    %v174 = vadd.f32 %v96, %v173
    %v175 = vpop.f32.mrb[0].mxu0
    %v176 = vadd.f32 %v100, %v175
    %177 = vdwg.mxu0
    %v178 = vtanh.pop %v174
    %v179 = vtanh.pop %v176
    %v180 = vld [vmem:[#allocation4] sm:$0xff]
    %v181 = vld [vmem:[#allocation4 + $0x8] sm:$0xff]
    %v182 = vld [vmem:[#allocation4 + $0x10] sm:$0xff]
    %v183 = vld [vmem:[#allocation4 + $0x18] sm:$0xff]
    %v184 = vld [vmem:[#allocation4 + $0x20] sm:$0xff]
    %v185 = vld [vmem:[#allocation4 + $0x28] sm:$0xff]
    %v186 = vld [vmem:[#allocation4 + $0x30] sm:$0xff]
    %v187 = vld [vmem:[#allocation4 + $0x38] sm:$0xff]
    %v188 = vld [vmem:[#allocation4 + $0x40] sm:$0xff]
    %v189 = vld [vmem:[#allocation4 + $0x48] sm:$0xff]
    %v190 = vld [vmem:[#allocation4 + $0x50] sm:$0xff]
    %v191 = vld [vmem:[#allocation4 + $0x58] sm:$0xff]
    %v192 = vld [vmem:[#allocation4 + $0x60] sm:$0xff]
    %v193 = vld [vmem:[#allocation4 + $0x68] sm:$0xff]
    %v194 = vld [vmem:[#allocation4 + $0x70] sm:$0xff]
    %v195 = vld [vmem:[#allocation4 + $0x78] sm:$0xff]
    %v196 = vld [vmem:[#allocation4 + $0x80] sm:$0xff]
    %v197 = vld [vmem:[#allocation4 + $0x88] sm:$0xff]
    %v198 = vld [vmem:[#allocation4 + $0x90] sm:$0xff]
    %v199 = vld [vmem:[#allocation4 + $0x98] sm:$0xff]
    %v200 = vld [vmem:[%s5] sm:$0x1]
    %v202 = vlaneseq
    %v203 = vshrl.u32 %v202, 7
    %v204 = vsub.s32 0, %v203
    %v205 = vrot.slane %v200, %v204
    %vm207 = vcmask 261120
    %v209 = vsel %vm207, %v179, 0
    %211 = vmatprep.subr.mxu0 0.0
    %212 = vmatpush1.msra.mxu0 %v180
    %213 = vmatprep.subr.mxu0 0.0
    %214 = vmatpush1.msra.mxu0 %v181
    %215 = vmatprep.subr.mxu0 0.0
    %216 = vmatpush1.msra.mxu0 %v182
    %217 = vmatprep.subr.mxu0 0.0
    %218 = vmatpush1.msra.mxu0 %v183
    %219 = vmatprep.subr.mxu0 0.0
    %220 = vmatpush1.msra.mxu0 %v184
    %221 = vmatprep.subr.mxu0 0.0
    %222 = vmatpush1.msra.mxu0 %v185
    %223 = vmatprep.subr.mxu0 0.0
    %224 = vmatpush1.msra.mxu0 %v186
    %225 = vmatprep.subr.mxu0 0.0
    %226 = vmatpush1.msra.mxu0 %v187
    %227 = vmatprep.subr.mxu0 0.0
    %228 = vmatpush1.msra.mxu0 %v188
    %229 = vmatprep.subr.mxu0 0.0
    %230 = vmatpush1.msra.mxu0 %v189
    %231 = vmatprep.subr.mxu0 0.0
    %232 = vmatpush1.msra.mxu0 %v190
    %233 = vmatprep.subr.mxu0 0.0
    %234 = vmatpush1.msra.mxu0 %v191
    %235 = vmatprep.subr.mxu0 0.0
    %236 = vmatpush1.msra.mxu0 %v192
    %237 = vmatprep.subr.mxu0 0.0
    %238 = vmatpush1.msra.mxu0 %v193
    %239 = vmatprep.subr.mxu0 0.0
    %240 = vmatpush1.msra.mxu0 %v194
    %241 = vmatprep.subr.mxu0 0.0
    %242 = vmatpush1.msra.mxu0 %v195
    %243 = vmatprep.subr.mxu0 0.0
    %244 = vmatpush1.msra.mxu0 %v196
    %245 = vmatprep.subr.mxu0 0.0
    %246 = vmatpush1.msra.mxu0 %v197
    %247 = vmatprep.subr.mxu0 0.0
    %248 = vmatpush1.msra.mxu0 %v198
    %249 = vmatprep.subr.mxu0 0.0
    %250 = vmatpush1.msra.mxu0 %v199
    %251 = vmatprep.subr.mxu0 0.0
    %252 = vmatpush1.msra.mxu0 0.0
    %253 = vmatprep.subr.mxu0 0.0
    %254 = vmatpush1.msra.mxu0 0.0
    %255 = vmatprep.subr.mxu0 0.0
    %256 = vmatpush1.msra.mxu0 0.0
    %257 = vmatprep.subr.mxu0 0.0
    %258 = vmatpush1.msra.mxu0 0.0
    %259 = vmatprep.subr.mxu0 0.0
    %260 = vmatpush1.msra.mxu0 0.0
    %261 = vmatprep.subr.mxu0 0.0
    %262 = vmatpush1.msra.mxu0 0.0
    %263 = vmatprep.subr.mxu0 0.0
    %264 = vmatpush1.msra.mxu0 0.0
    %265 = vmatprep.subr.mxu0 0.0
    %266 = vmatpush1.msra.mxu0 0.0
    %267 = vmatprep.subr.mxu0 0.0
    %268 = vmatpush1.msra.mxu0 0.0
    %269 = vmatprep.subr.mxu0 0.0
    %270 = vmatpush1.msra.mxu0 0.0
    %271 = vmatprep.subr.mxu0 0.0
    %272 = vmatpush1.msra.mxu0 0.0
    %273 = vmatprep.subr.mxu0 0.0
    %274 = vmatpush1.msra.mxu0 0.0
    %275 = vmatprep.mubr.f32.mxu0 %v209
    %276 = vmatmul.mubr.f32.gmra.mrb[0].mxu0 %v178
    %v277 = vpop.f32.mrb[0].mxu0
    %v278 = vadd.f32 %v205, %v277
    %v279 = vpop.f32.mrb[0].mxu0
    %280 = vdwg.mxu0
    %v281 = vtanh.pop %v278
    %v282 = vld [vmem:[#allocation6] sm:$0xff]
    %v283 = vld [vmem:[#allocation6 + $0x8] sm:$0xff]
    %v284 = vld [vmem:[#allocation6 + $0x10] sm:$0xff]
    %v285 = vld [vmem:[#allocation6 + $0x18] sm:$0xff]
    %v286 = vld [vmem:[#allocation6 + $0x20] sm:$0xff]
    %v287 = vld [vmem:[#allocation6 + $0x28] sm:$0xff]
    %v288 = vld [vmem:[#allocation6 + $0x30] sm:$0xff]
    %v289 = vld [vmem:[#allocation6 + $0x38] sm:$0xff]
    %v290 = vld [vmem:[#allocation6 + $0x40] sm:$0xff]
    %v291 = vld [vmem:[#allocation6 + $0x48] sm:$0xff]
    %v292 = vld [vmem:[#allocation6 + $0x50] sm:$0xff]
    %v293 = vld [vmem:[#allocation6 + $0x58] sm:$0xff]
    %v294 = vld [vmem:[#allocation6 + $0x60] sm:$0xff]
    %v295 = vld [vmem:[#allocation6 + $0x68] sm:$0xff]
    %v296 = vld [vmem:[#allocation6 + $0x70] sm:$0xff]
    %v297 = vld [vmem:[#allocation6 + $0x78] sm:$0xff]
    %v298 = vld [vmem:[%s7] sm:$0x1]
    %v300 = vlaneseq
    %v301 = vshrl.u32 %v300, 7
    %v302 = vsub.s32 0, %v301
    %v303 = vrot.slane %v298, %v302
    %305 = vmatprep.subr.mxu0 0.0
    %306 = vmatpush1.msra.mxu0 %v282
    %307 = vmatprep.subr.mxu0 0.0
    %308 = vmatpush1.msra.mxu0 %v283
    %309 = vmatprep.subr.mxu0 0.0
    %310 = vmatpush1.msra.mxu0 %v284
    %311 = vmatprep.subr.mxu0 0.0
    %312 = vmatpush1.msra.mxu0 %v285
    %313 = vmatprep.subr.mxu0 0.0
    %314 = vmatpush1.msra.mxu0 %v286
    %315 = vmatprep.subr.mxu0 0.0
    %316 = vmatpush1.msra.mxu0 %v287
    %317 = vmatprep.subr.mxu0 0.0
    %318 = vmatpush1.msra.mxu0 %v288
    %319 = vmatprep.subr.mxu0 0.0
    %320 = vmatpush1.msra.mxu0 %v289
    %321 = vmatprep.subr.mxu0 0.0
    %322 = vmatpush1.msra.mxu0 %v290
    %323 = vmatprep.subr.mxu0 0.0
    %324 = vmatpush1.msra.mxu0 %v291
    %325 = vmatprep.subr.mxu0 0.0
    %326 = vmatpush1.msra.mxu0 %v292
    %327 = vmatprep.subr.mxu0 0.0
    %328 = vmatpush1.msra.mxu0 %v293
    %329 = vmatprep.subr.mxu0 0.0
    %330 = vmatpush1.msra.mxu0 %v294
    %331 = vmatprep.subr.mxu0 0.0
    %332 = vmatpush1.msra.mxu0 %v295
    %333 = vmatprep.subr.mxu0 0.0
    %334 = vmatpush1.msra.mxu0 %v296
    %335 = vmatprep.subr.mxu0 0.0
    %336 = vmatpush1.msra.mxu0 %v297
    %337 = vmatprep.subr.mxu0 0.0
    %338 = vmatpush1.msra.mxu0 0.0
    %339 = vmatprep.subr.mxu0 0.0
    %340 = vmatpush1.msra.mxu0 0.0
    %341 = vmatprep.subr.mxu0 0.0
    %342 = vmatpush1.msra.mxu0 0.0
    %343 = vmatprep.subr.mxu0 0.0
    %344 = vmatpush1.msra.mxu0 0.0
    %345 = vmatprep.subr.mxu0 0.0
    %346 = vmatpush1.msra.mxu0 0.0
    %347 = vmatprep.subr.mxu0 0.0
    %348 = vmatpush1.msra.mxu0 0.0
    %349 = vmatprep.subr.mxu0 0.0
    %350 = vmatpush1.msra.mxu0 0.0
    %351 = vmatprep.subr.mxu0 0.0
    %352 = vmatpush1.msra.mxu0 0.0
    %353 = vmatprep.subr.mxu0 0.0
    %354 = vmatpush1.msra.mxu0 0.0
    %355 = vmatprep.subr.mxu0 0.0
    %356 = vmatpush1.msra.mxu0 0.0
    %357 = vmatprep.subr.mxu0 0.0
    %358 = vmatpush1.msra.mxu0 0.0
    %359 = vmatprep.subr.mxu0 0.0
    %360 = vmatpush1.msra.mxu0 0.0
    %361 = vmatprep.subr.mxu0 0.0
    %362 = vmatpush1.msra.mxu0 0.0
    %363 = vmatprep.subr.mxu0 0.0
    %364 = vmatpush1.msra.mxu0 0.0
    %365 = vmatprep.subr.mxu0 0.0
    %366 = vmatpush1.msra.mxu0 0.0
    %367 = vmatprep.subr.mxu0 0.0
    %368 = vmatpush1.msra.mxu0 0.0
    %369 = vmatprep.mubr.f32.mxu0 0.0
    %370 = vmatmul.mubr.f32.gmra.mrb[0].mxu0 %v281
    %v371 = vpop.f32.mrb[0].mxu0
    %v372 = vadd.f32 %v303, %v371
    %v373 = vpop.f32.mrb[0].mxu0
    %374 = vdwg.mxu0
    %v375 = vld [vmem:[%s1] sm:$0xff]
    %v376 = vsub.f32 %v375, %v372
    %v377 = vmul.f32 %v376, %v376
    %vm378 = vcmask 31744
    %v379 = vsel %vm378, %v377, 0.0
    %380 = vadd.xlane.f32.xlu0 %v379
    %v381 = vpop.xlane.xlu0 %380
    %v382 = vmul.f32 %v381, 4.0
    %v383 = vmul.f32 %v382, 0.5
    %v384 = vsub.f32 -0.9031654, %v383
    %v385 = vlaneseq
    %v386 = vand.u32 %v385, 127
    %vm387 = vcmp.eq.s32.totalorder %v386, 4
    %v388 = vsel %vm387, %v384, %v372
    %vm389 = vcmask 64512
    %390 = vst.msk [vmem:[%s8] sm:$0xff] %vm389, %v388
    // Predicated region
    $region46: #{evaluate.1} parent=1 // pred_check
      _
    $region47: #{evaluate.1} parent=1 // pred_check_branch
      %392 = sbr.rel (0) target = $region49
    $region48: #{evaluate.1} parent=1 // pred_region
      _
    $region49: #{evaluate.1} parent=1 // pred_fallthru
      _
    // Predicated region
    $region50: #{evaluate.1} parent=1 // pred_check
      _
    $region51: #{evaluate.1} parent=1 // pred_check_branch
      %394 = sbr.rel (0) target = $region53
    $region52: #{evaluate.1} parent=1 // pred_region
      _
    $region53: #{evaluate.1} parent=1 // pred_fallthru
      _
    %395 = vsyncpa [#allocation3], 1
    %396 = vsyncpa [#allocation5], 1

</llo_original>
